<compile_context>
chip_gen: v7x
topology: tpu7x:2x2x1
jax: 0.10.0
libtpu: 0.0.40
codegen_flags: <defaults>
</compile_context>

<pallas_src>
import functools
import jax
import jax.numpy as jnp
from jax.experimental import pallas as pl
from jax.experimental.pallas import tpu as pltpu


# --------------------- phase 1: grouped conv + bias + ReLU + partial GAP ---------------------

def _conv_gap_kernel(cols_ref, w_ref, b_ref, xact_ref, gap_ref, *, radix_groups, inv_hw):
    # cols_ref: (1, G, Kdim, THW) bf16    w_ref: (G, Cg, Kdim) bf16    b_ref: (G, Cg, 1) f32
    # xact_ref: (1, G, Cg, THW) bf16 out  gap_ref: (1, Cg, 1) f32 accumulator over HW tiles
    hw_idx = pl.program_id(1)

    @pl.when(hw_idx == 0)
    def _():
        gap_ref[...] = jnp.zeros_like(gap_ref)

    gap_part = None
    for g in range(radix_groups):
        # (Cg, Kdim) x (Kdim, THW) on the MXU, f32 accumulation; bias + ReLU fused
        # (bn0 absent: norm=None; dropblock_prob=0).
        acc = jnp.dot(w_ref[g], cols_ref[0, g], preferred_element_type=jnp.float32)
        act = jnp.maximum(acc + b_ref[g], 0.0)                      # (Cg, THW) f32
        xact_ref[0, g] = act.astype(xact_ref.dtype)                 # bf16, lane-dense store
        # radix sum + GAP partial accumulated in-loop: XLU lane reduce (MXU is busy, XLU idle).
        part = jnp.sum(act, axis=-1, keepdims=True)                 # (Cg, 1)
        gap_part = part if gap_part is None else gap_part + part

    gap_ref[0] += gap_part * inv_hw


# --------------------- attention weights: fc1 -> ReLU -> fc2 -> rSoftMax ---------------------

def _attention_kernel(gap_ref, w1t_ref, b1_ref, w2t_ref, b2_ref, att_ref, *, radix, cg):
    # gap_ref: (N, Cg) f32; w1t: (Cg, IC); b1: (1, IC); w2t: (IC, R*Cg); b2: (1, R*Cg)
    # att_ref: (N, R, Cg) f32 -- batched over all N, runs once per forward.
    h = jnp.maximum(
        jnp.dot(gap_ref[...], w1t_ref[...], preferred_element_type=jnp.float32) + b1_ref[...],
        0.0)
    a = jnp.dot(h, w2t_ref[...], preferred_element_type=jnp.float32) + b2_ref[...]
    if radix > 1:
        # rSoftMax (cardinality == 1): softmax across radix chunks, per channel. Exact division.
        chunks = [a[:, r * cg:(r + 1) * cg] for r in range(radix)]
        m = chunks[0]
        for r in range(1, radix):
            m = jnp.maximum(m, chunks[r])
        es = [jnp.exp(c - m) for c in chunks]
        den = es[0]
        for r in range(1, radix):
            den = den + es[r]
        for r in range(radix):
            att_ref[:, r] = es[r] / den
    else:
        att_ref[:, 0] = jax.nn.sigmoid(a)


# --------------------- phase 2: attention recombination ---------------------

def _recombine_kernel(xact_ref, att_ref, o_ref, *, radix_groups):
    # xact_ref: (1, G, Cg, THW) bf16   att_ref: (1, G, Cg, 1) f32   o_ref: (1, Cg, THW) f32
    out = att_ref[0, 0] * xact_ref[0, 0].astype(jnp.float32)
    for g in range(1, radix_groups):
        out = out + att_ref[0, g] * xact_ref[0, g].astype(jnp.float32)
    o_ref[0] = out                                                  # lane-dense store


# --------------------- JAX glue: deformable bilinear im2col (irregular gather) ---------------

def _deform_im2col(x, offsets, kh, kw, stride, pad, dil, groups_total):
    """Deformable-conv bilinear sampling (deformable_groups=1, zero padding).

    x: (N, Cin, H, W); offsets: (N, 2*kh*kw, Ho, Wo) as (dy, dx) pairs per tap.
    Returns cols of shape (N, G, Cin_g*K, Ho*Wo) in bf16 (4-corner blend done in bf16 to
    halve the 9x-inflated HBM intermediates); contraction dim flattened as (cin_g, kh, kw)
    to match the PyTorch weight layout.
    """
    N, Cin, H, W = x.shape
    Ho = (H + 2 * pad - dil * (kh - 1) - 1) // stride + 1
    Wo = (W + 2 * pad - dil * (kw - 1) - 1) // stride + 1
    K = kh * kw
    Cin_g = Cin // groups_total

    off = offsets.reshape(N, K, 2, Ho, Wo).astype(jnp.float32)
    dy, dx = off[:, :, 0], off[:, :, 1]                             # (N, K, Ho, Wo)

    ky = jnp.repeat(jnp.arange(kh), kw).astype(jnp.float32)         # (K,)
    kx = jnp.tile(jnp.arange(kw), kh).astype(jnp.float32)
    base_y = (jnp.arange(Ho) * stride - pad).astype(jnp.float32)
    base_x = (jnp.arange(Wo) * stride - pad).astype(jnp.float32)

    p_y = base_y[None, None, :, None] + (ky * dil)[None, :, None, None] + dy
    p_x = base_x[None, None, None, :] + (kx * dil)[None, :, None, None] + dx

    y0 = jnp.floor(p_y)
    x0 = jnp.floor(p_x)
    ly, lx = p_y - y0, p_x - x0
    hy, hx = 1.0 - ly, 1.0 - lx

    x_bf = x.astype(jnp.bfloat16)
    n_idx = jnp.arange(N)[:, None, None, None, None]                # (N,1,1,1,1)
    c_idx = jnp.arange(Cin)[None, :, None, None, None]              # (1,Cin,1,1,1)

    def corner(yi, xi, wgt):
        valid = (yi >= 0) & (yi <= H - 1) & (xi >= 0) & (xi <= W - 1)
        yc = jnp.clip(yi, 0, H - 1).astype(jnp.int32)[:, None]      # (N,1,K,Ho,Wo)
        xc = jnp.clip(xi, 0, W - 1).astype(jnp.int32)[:, None]
        wv = (wgt * valid.astype(jnp.float32))[:, None].astype(jnp.bfloat16)
        v = x_bf[n_idx, c_idx, yc, xc]                              # (N,Cin,K,Ho,Wo) bf16
        return v * wv

    v = (corner(y0, x0, hy * hx) + corner(y0, x0 + 1.0, hy * lx)
         + corner(y0 + 1.0, x0, ly * hx) + corner(y0 + 1.0, x0 + 1.0, ly * lx))
    # (N, Cin, K, Ho, Wo) -> (N, G, Cin_g*K, HW): pure dim-merge, no transpose.
    cols = v.reshape(N, groups_total, Cin_g * K, Ho * Wo)
    return cols, Ho, Wo


def _pick_hw_tile(hw, max_tile=1024):
    """Largest divisor of hw <= max_tile; prefer 256-multiples (v6e/v7x MXU), then 128 (v5e)."""
    if hw <= max_tile:
        return hw
    for mult in (256, 128):
        for t in range(max_tile, 0, -1):
            if hw % t == 0 and t % mult == 0:
                return t
    return hw


# --------------------- wrapper ---------------------

def splat_conv2d_dcn(x, offset_input, params, *, radix=2, groups=1,
                     kernel_size=3, stride=1, padding=1, dilation=1):
    assert groups == 1, "rSoftMax / recombination implemented for cardinality=1 only"
    N, Cin, H, W = x.shape
    G = groups * radix
    Cout = params["conv_w"].shape[0]          # channels * radix
    Cg = Cout // G                            # = channels (groups == 1)
    Cin_g = Cin // G
    K = kernel_size * kernel_size
    Kdim = Cin_g * K
    IC = params["fc1_w"].shape[0]

    # --- deformable sampling + im2col (plain-JAX gather glue), bf16 heavy stream ---
    cols_bf, Ho, Wo = _deform_im2col(x, offset_input, kernel_size, kernel_size,
                                     stride, padding, dilation, G)
    HW = Ho * Wo
    THW = _pick_hw_tile(HW)

    w_bf = params["conv_w"].reshape(G, Cg, Kdim).astype(jnp.bfloat16)
    b = params["conv_b"].reshape(G, Cg, 1).astype(jnp.float32)
    w1t = params["fc1_w"].reshape(IC, Cg).T.astype(jnp.float32)      # (Cg, IC)
    b1 = params["fc1_b"].reshape(1, IC).astype(jnp.float32)
    w2t = params["fc2_w"].reshape(Cout, IC).T.astype(jnp.float32)    # (IC, Cout)
    b2 = params["fc2_b"].reshape(1, Cout).astype(jnp.float32)

    # ---------------- phase 1: conv + bias + ReLU + partial GAP ----------------
    x_act, gap = pl.pallas_call(
        functools.partial(_conv_gap_kernel, radix_groups=G, inv_hw=1.0 / HW),
        out_shape=(jax.ShapeDtypeStruct((N, G, Cg, HW), jnp.bfloat16),
                   jax.ShapeDtypeStruct((N, Cg, 1), jnp.float32)),
        grid_spec=pltpu.PrefetchScalarGridSpec(
            num_scalar_prefetch=0,
            grid=(N, HW // THW),
            in_specs=[
                pl.BlockSpec((1, G, Kdim, THW), lambda n, h: (n, 0, 0, h)),
                # grid-invariant operands: single-buffered (second pipeline buffer is waste)
                pl.BlockSpec((G, Cg, Kdim), lambda n, h: (0, 0, 0),
                             pipeline_mode=pl.Buffered(buffer_count=1)),
                pl.BlockSpec((G, Cg, 1), lambda n, h: (0, 0, 0),
                             pipeline_mode=pl.Buffered(buffer_count=1)),
            ],
            out_specs=[
                pl.BlockSpec((1, G, Cg, THW), lambda n, h: (n, 0, 0, h)),
                pl.BlockSpec((1, Cg, 1), lambda n, h: (n, 0, 0)),     # GAP accumulator over h
            ],
        ),
        compiler_params=pltpu.CompilerParams(
            dimension_semantics=("parallel", "arbitrary"),
            vmem_limit_bytes=64 * 1024 * 1024),
    )(cols_bf, w_bf, b)

    # ---------------- attention weights (batched over N, one tiny call) ----------------
    att = pl.pallas_call(
        functools.partial(_attention_kernel, radix=radix, cg=Cg),
        out_shape=jax.ShapeDtypeStruct((N, radix, Cg), jnp.float32),
    )(gap.reshape(N, Cg), w1t, b1, w2t, b2)

    # ---------------- phase 2: attention recombination ----------------
    out = pl.pallas_call(
        functools.partial(_recombine_kernel, radix_groups=G),
        out_shape=jax.ShapeDtypeStruct((N, Cg, HW), jnp.float32),
        grid_spec=pltpu.PrefetchScalarGridSpec(
            num_scalar_prefetch=0,
            grid=(N, HW // THW),
            in_specs=[
                pl.BlockSpec((1, G, Cg, THW), lambda n, h: (n, 0, 0, h)),
                pl.BlockSpec((1, G, Cg, 1), lambda n, h: (n, 0, 0, 0)),
            ],
            out_specs=pl.BlockSpec((1, Cg, THW), lambda n, h: (n, 0, h)),
        ),
        compiler_params=pltpu.CompilerParams(
            dimension_semantics=("parallel", "parallel"),   # both axes shard across v7x's 2 TCs
            vmem_limit_bytes=64 * 1024 * 1024),
    )(x_act, att.reshape(N, G, Cg, 1))

    # (N, Cg, HW) is already NCHW once HW is unflattened -- no transpose needed.
    return out.reshape(N, Cg, Ho, Wo)


# --------------------- pure-JAX reference (sanity check) ---------------------

def _reference(x, offset_input, params, *, radix, groups, kernel_size,
               stride, padding, dilation):
    N, Cin, H, W = x.shape
    G = groups * radix
    Cout = params["conv_w"].shape[0]
    Cg = Cout // G
    Cin_g = Cin // G
    K = kernel_size * kernel_size
    Kdim = Cin_g * K

    cols, Ho, Wo = _deform_im2col(x, offset_input, kernel_size, kernel_size,
                                  stride, padding, dilation, G)
    w = params["conv_w"].reshape(G, Cg, Kdim).astype(jnp.bfloat16)
    b = params["conv_b"].reshape(G, Cg, 1).astype(jnp.float32)
    x_act = jnp.maximum(
        jnp.einsum("ngkp,gck->ngcp", cols, w, preferred_element_type=jnp.float32)
        + b[None], 0.0)                                              # (N, G, Cg, HW) f32

    gap = jnp.mean(jnp.sum(x_act, axis=1), axis=-1)                  # (N, Cg)
    IC = params["fc1_w"].shape[0]
    w1 = params["fc1_w"].reshape(IC, Cg)
    w2 = params["fc2_w"].reshape(Cout, IC)
    h = jnp.maximum(gap @ w1.T + params["fc1_b"][None], 0.0)         # (N, IC)
    a = (h @ w2.T + params["fc2_b"][None]).reshape(N, radix, Cg)
    att = jax.nn.softmax(a, axis=1)
    x_act_bf = x_act.astype(jnp.bfloat16).astype(jnp.float32)        # mirror bf16 x_act storage
    out = jnp.sum(att[:, :, :, None] * x_act_bf, axis=1)             # (N, Cg, HW)
    return out.reshape(N, Cg, Ho, Wo)


# --------------------- main ---------------------

if __name__ == "__main__":
    # module config
    N, in_channels, H, W = 2, 8, 16, 16
    channels, radix, groups = 8, 2, 1
    kernel_size, stride, padding, dilation = 3, 1, 1, 1
    reduction_factor = 4
    inter_channels = max(in_channels * radix // reduction_factor, 32)   # 32
    Cout = channels * radix
    Cin_g = in_channels // (groups * radix)

    key = jax.random.PRNGKey(0)
    ks = jax.random.split(key, 8)
    params = {
        "conv_w": 0.1 * jax.random.normal(ks[0], (Cout, Cin_g, kernel_size, kernel_size), jnp.float32),
        "conv_b": 0.1 * jax.random.normal(ks[1], (Cout,), jnp.float32),
        "fc1_w": 0.1 * jax.random.normal(ks[2], (inter_channels, channels, 1, 1), jnp.float32),
        "fc1_b": 0.1 * jax.random.normal(ks[3], (inter_channels,), jnp.float32),
        "fc2_w": 0.1 * jax.random.normal(ks[4], (Cout, inter_channels, 1, 1), jnp.float32),
        "fc2_b": 0.1 * jax.random.normal(ks[5], (Cout,), jnp.float32),
    }
    x = jax.random.normal(ks[6], (N, in_channels, H, W), jnp.float32)
    # non-modulated deform conv offsets: (N, 2*kh*kw*deformable_groups, Ho, Wo)
    offset_input = 0.5 * jax.random.normal(ks[7], (N, 2 * kernel_size * kernel_size, H, W), jnp.float32)

    out = splat_conv2d_dcn(x, offset_input, params, radix=radix, groups=groups,
                           kernel_size=kernel_size, stride=stride,
                           padding=padding, dilation=dilation)
    out = jax.block_until_ready(out)

    ref = _reference(x, offset_input, params, radix=radix, groups=groups,
                     kernel_size=kernel_size, stride=stride,
                     padding=padding, dilation=dilation)
    assert out.shape == (N, channels, H, W), out.shape
    assert jnp.allclose(out, ref, rtol=1e-2, atol=1e-3), "mismatch vs reference"
    print("KERNEL_OK")
</pallas_src>

<mosaic_0001>
module attributes {stable_mosaic.version = 11 : i64} {
  func.func @_conv_gap_kernel(%arg0: i32, %arg1: i32, %arg2: memref<1x2x36x256xbf16, #tpu.memory_space<vmem>>, %arg3: memref<2x8x36xbf16, #tpu.memory_space<vmem>>, %arg4: memref<2x8x1xf32, #tpu.memory_space<vmem>>, %arg5: memref<1x2x8x256xbf16, #tpu.memory_space<vmem>>, %arg6: memref<1x8x1xf32, #tpu.memory_space<vmem>>) attributes {dimension_semantics = [#tpu.dimension_semantics<parallel>, #tpu.dimension_semantics<arbitrary>], iteration_bounds = array<i64: 2, 1>, scalar_prefetch = 0 : i64, scratch_operands = 0 : i64, tpu.core_type = #tpu.core_type<tc>, window_params = [{transform_indices = @transform_0, window_bounds = array<i64: 1, 2, 36, 256>}, {pipeline_mode = #tpu.pipeline_mode<synchronous>, transform_indices = @transform_1, window_bounds = array<i64: 2, 8, 36>}, {pipeline_mode = #tpu.pipeline_mode<synchronous>, transform_indices = @transform_2, window_bounds = array<i64: 2, 8, 1>}, {transform_indices = @transform_3, window_bounds = array<i64: 1, 2, 8, 256>}, {transform_indices = @transform_4, window_bounds = array<i64: 1, 8, 1>}]} {
    %c0_i32 = arith.constant 0 : i32
    %0 = arith.cmpi eq, %arg1, %c0_i32 : i32
    %1 = arith.extui %0 : i1 to i32
    %c0_i32_0 = arith.constant 0 : i32
    %2 = arith.cmpi ne, %1, %c0_i32_0 : i32
    scf.if %2 {
      %cst_39 = arith.constant 0.000000e+00 : f32
      %46 = vector.broadcast %cst_39 : f32 to vector<1x8x1xf32>
      %c0_40 = arith.constant 0 : index
      %c0_41 = arith.constant 0 : index
      %c0_42 = arith.constant 0 : index
      %47 = vector.load %arg6[%c0_40, %c0_41, %c0_42] : memref<1x8x1xf32, #tpu.memory_space<vmem>>, vector<1x8x1xf32>
      tpu.vector_store %arg6[%c0_40, %c0_41, %c0_42], %46 {strides = array<i32>} : memref<1x8x1xf32, #tpu.memory_space<vmem>>, vector<1x8x1xf32>,
    } else {
    }
    %c0 = arith.constant 0 : index
    %c0_1 = arith.constant 0 : index
    %c0_2 = arith.constant 0 : index
    %3 = vector.load %arg3[%c0, %c0_1, %c0_2] : memref<2x8x36xbf16, #tpu.memory_space<vmem>>, vector<1x8x36xbf16>
    %4 = vector.shape_cast %3 : vector<1x8x36xbf16> to vector<8x36xbf16>
    %c0_3 = arith.constant 0 : index
    %c0_4 = arith.constant 0 : index
    %c0_5 = arith.constant 0 : index
    %c0_6 = arith.constant 0 : index
    %5 = vector.load %arg2[%c0_3, %c0_4, %c0_5, %c0_6] : memref<1x2x36x256xbf16, #tpu.memory_space<vmem>>, vector<1x1x36x256xbf16>
    %6 = vector.shape_cast %5 : vector<1x1x36x256xbf16> to vector<36x256xbf16>
    %cst = arith.constant dense<0.000000e+00> : vector<8x256xf32>
    %7 = tpu.matmul %4, %6, %cst {dimension_numbers = #tpu.dot_dimension_numbers<[1], [0], [0], [1], [0, 0, 1, 1], [], []>} : vector<8x36xbf16>, vector<36x256xbf16>, vector<8x256xf32> -> vector<8x256xf32>
    %c0_7 = arith.constant 0 : index
    %c0_8 = arith.constant 0 : index
    %c0_9 = arith.constant 0 : index
    %8 = vector.load %arg4[%c0_7, %c0_8, %c0_9] : memref<2x8x1xf32, #tpu.memory_space<vmem>>, vector<1x8x1xf32>
    %9 = vector.shape_cast %8 : vector<1x8x1xf32> to vector<8x1xf32>
    %10 = vector.broadcast %9 : vector<8x1xf32> to vector<8x256xf32>
    %11 = arith.addf %7, %10 : vector<8x256xf32>
    %cst_10 = arith.constant 0.000000e+00 : f32
    %12 = vector.broadcast %cst_10 : f32 to vector<8x256xf32>
    %13 = arith.maximumf %11, %12 : vector<8x256xf32>
    %14 = arith.truncf %13 : vector<8x256xf32> to vector<8x256xbf16>
    %c0_11 = arith.constant 0 : index
    %c0_12 = arith.constant 0 : index
    %c0_13 = arith.constant 0 : index
    %c0_14 = arith.constant 0 : index
    %15 = vector.load %arg5[%c0_11, %c0_12, %c0_13, %c0_14] : memref<1x2x8x256xbf16, #tpu.memory_space<vmem>>, vector<1x1x8x256xbf16>
    %16 = vector.shape_cast %15 : vector<1x1x8x256xbf16> to vector<8x256xbf16>
    %17 = vector.shape_cast %14 : vector<8x256xbf16> to vector<1x1x8x256xbf16>
    tpu.vector_store %arg5[%c0_11, %c0_12, %c0_13, %c0_14], %17 {strides = array<i32>} : memref<1x2x8x256xbf16, #tpu.memory_space<vmem>>, vector<1x1x8x256xbf16>,
    %cst_15 = arith.constant dense<0.000000e+00> : vector<8xf32>
    %18 = vector.multi_reduction <add>, %13, %cst_15 [1] : vector<8x256xf32> to vector<8xf32>
    %19 = vector.shape_cast %18 : vector<8xf32> to vector<8x1xf32>
    %c1 = arith.constant 1 : index
    %c0_16 = arith.constant 0 : index
    %c0_17 = arith.constant 0 : index
    %20 = vector.load %arg3[%c1, %c0_16, %c0_17] : memref<2x8x36xbf16, #tpu.memory_space<vmem>>, vector<1x8x36xbf16>
    %21 = vector.shape_cast %20 : vector<1x8x36xbf16> to vector<8x36xbf16>
    %c0_18 = arith.constant 0 : index
    %c1_19 = arith.constant 1 : index
    %c0_20 = arith.constant 0 : index
    %c0_21 = arith.constant 0 : index
    %22 = vector.load %arg2[%c0_18, %c1_19, %c0_20, %c0_21] : memref<1x2x36x256xbf16, #tpu.memory_space<vmem>>, vector<1x1x36x256xbf16>
    %23 = vector.shape_cast %22 : vector<1x1x36x256xbf16> to vector<36x256xbf16>
    %cst_22 = arith.constant dense<0.000000e+00> : vector<8x256xf32>
    %24 = tpu.matmul %21, %23, %cst_22 {dimension_numbers = #tpu.dot_dimension_numbers<[1], [0], [0], [1], [0, 0, 1, 1], [], []>} : vector<8x36xbf16>, vector<36x256xbf16>, vector<8x256xf32> -> vector<8x256xf32>
    %c1_23 = arith.constant 1 : index
    %c0_24 = arith.constant 0 : index
    %c0_25 = arith.constant 0 : index
    %25 = vector.load %arg4[%c1_23, %c0_24, %c0_25] : memref<2x8x1xf32, #tpu.memory_space<vmem>>, vector<1x8x1xf32>
    %26 = vector.shape_cast %25 : vector<1x8x1xf32> to vector<8x1xf32>
    %27 = vector.broadcast %26 : vector<8x1xf32> to vector<8x256xf32>
    %28 = arith.addf %24, %27 : vector<8x256xf32>
    %cst_26 = arith.constant 0.000000e+00 : f32
    %29 = vector.broadcast %cst_26 : f32 to vector<8x256xf32>
    %30 = arith.maximumf %28, %29 : vector<8x256xf32>
    %31 = arith.truncf %30 : vector<8x256xf32> to vector<8x256xbf16>
    %c0_27 = arith.constant 0 : index
    %c1_28 = arith.constant 1 : index
    %c0_29 = arith.constant 0 : index
    %c0_30 = arith.constant 0 : index
    %32 = vector.load %arg5[%c0_27, %c1_28, %c0_29, %c0_30] : memref<1x2x8x256xbf16, #tpu.memory_space<vmem>>, vector<1x1x8x256xbf16>
    %33 = vector.shape_cast %32 : vector<1x1x8x256xbf16> to vector<8x256xbf16>
    %34 = vector.shape_cast %31 : vector<8x256xbf16> to vector<1x1x8x256xbf16>
    tpu.vector_store %arg5[%c0_27, %c1_28, %c0_29, %c0_30], %34 {strides = array<i32>} : memref<1x2x8x256xbf16, #tpu.memory_space<vmem>>, vector<1x1x8x256xbf16>,
    %cst_31 = arith.constant dense<0.000000e+00> : vector<8xf32>
    %35 = vector.multi_reduction <add>, %30, %cst_31 [1] : vector<8x256xf32> to vector<8xf32>
    %36 = vector.shape_cast %35 : vector<8xf32> to vector<8x1xf32>
    %37 = arith.addf %19, %36 : vector<8x1xf32>
    %c0_32 = arith.constant 0 : index
    %c0_33 = arith.constant 0 : index
    %c0_34 = arith.constant 0 : index
    %38 = vector.load %arg6[%c0_32, %c0_33, %c0_34] : memref<1x8x1xf32, #tpu.memory_space<vmem>>, vector<1x8x1xf32>
    %39 = vector.shape_cast %38 : vector<1x8x1xf32> to vector<8x1xf32>
    %cst_35 = arith.constant 3.906250e-03 : f32
    %40 = vector.broadcast %cst_35 : f32 to vector<8x1xf32>
    %41 = arith.mulf %37, %40 : vector<8x1xf32>
    %42 = arith.addf %39, %41 : vector<8x1xf32>
    %c0_36 = arith.constant 0 : index
    %c0_37 = arith.constant 0 : index
    %c0_38 = arith.constant 0 : index
    %43 = vector.load %arg6[%c0_36, %c0_37, %c0_38] : memref<1x8x1xf32, #tpu.memory_space<vmem>>, vector<1x8x1xf32>
    %44 = vector.shape_cast %43 : vector<1x8x1xf32> to vector<8x1xf32>
    %45 = vector.shape_cast %42 : vector<8x1xf32> to vector<1x8x1xf32>
    tpu.vector_store %arg6[%c0_36, %c0_37, %c0_38], %45 {strides = array<i32>} : memref<1x8x1xf32, #tpu.memory_space<vmem>>, vector<1x8x1xf32>,
    return
  }
  func.func @transform_0(%arg0: i32, %arg1: i32) -> (i32, i32, i32, i32) {
    %c0_i32 = arith.constant 0 : i32
    %c0_i32_0 = arith.constant 0 : i32
    %c0_i32_1 = arith.constant 0 : i32
    return %arg0, %c0_i32, %c0_i32_0, %arg1 : i32, i32, i32, i32
  }
  func.func @transform_1(%arg0: i32, %arg1: i32) -> (i32, i32, i32) {
    %c0_i32 = arith.constant 0 : i32
    %c0_i32_0 = arith.constant 0 : i32
    %c0_i32_1 = arith.constant 0 : i32
    %c0_i32_2 = arith.constant 0 : i32
    return %c0_i32, %c0_i32_0, %c0_i32_1 : i32, i32, i32
  }
  func.func @transform_2(%arg0: i32, %arg1: i32) -> (i32, i32, i32) {
    %c0_i32 = arith.constant 0 : i32
    %c0_i32_0 = arith.constant 0 : i32
    %c0_i32_1 = arith.constant 0 : i32
    %c0_i32_2 = arith.constant 0 : i32
    return %c0_i32, %c0_i32_0, %c0_i32_1 : i32, i32, i32
  }
  func.func @transform_3(%arg0: i32, %arg1: i32) -> (i32, i32, i32, i32) {
    %c0_i32 = arith.constant 0 : i32
    %c0_i32_0 = arith.constant 0 : i32
    %c0_i32_1 = arith.constant 0 : i32
    return %arg0, %c0_i32, %c0_i32_0, %arg1 : i32, i32, i32, i32
  }
  func.func @transform_4(%arg0: i32, %arg1: i32) -> (i32, i32, i32) {
    %c0_i32 = arith.constant 0 : i32
    %c0_i32_0 = arith.constant 0 : i32
    %c0_i32_1 = arith.constant 0 : i32
    return %arg0, %c0_i32, %c0_i32_0 : i32, i32, i32
  }
}

</mosaic_0001>

<llo_original>
// kernel: tpu_custom_call.1
$region0: #{tpu_custom_call.1}
  #allocation0 [shape = 'u32[]', space=smem, size = 0x4, offset = 0x4, fixed_abs, tag = 'smem constant byte address 0x4 - core index']
  #allocation1 [shape = 'u32[144,128]{1,0:T(1,128)}', space=vmem, size = 0x12000, scoped, tag = 'internal scratch']
  %s0 = inlined_call_operand.hbm [shape: bf16[2,2,36,256], index: 0, kind: input, shape index: {}]
  %s1 = inlined_call_operand.hbm [shape: bf16[2,8,36], index: 1, kind: input, shape index: {}]
  %s2 = inlined_call_operand.hbm [shape: f32[2,8,1], index: 2, kind: input, shape index: {}]
  %s3 = inlined_call_operand.hbm [shape: bf16[2,2,8,256], index: 3, kind: output, shape index: {0}]
  %s4 = inlined_call_operand.hbm [shape: f32[2,8,1], index: 4, kind: output, shape index: {1}]
  %5 = xla_tuple %s3, %s4
  %s6 = sld [smem:[#allocation0]]
  $region69: #{tpu_custom_call.1} parent=0
    _
  %s8 = ssub.s32 1, %s6
  %s9 = scalar_select 0, %s8, %s6
  $region1: #{tpu_custom_call.1} parent=0
    #allocation2 [shape = 'u8[81920]{0}', space=vmem, size = 0x14000, scoped, tag = 'input window, operand 0']
    #allocation3 [shape = 's32[2]{0}', space=sflag, size = 0x8, scoped, tag = 'scoped memory for tpu_custom_call.1']
    #allocation4 [shape = 's32[2]{0}', space=sflag, size = 0x8, scoped, tag = 'scoped memory for tpu_custom_call.1']
    #allocation5 [shape = 'u8[4096]{0}', space=vmem, size = 0x1000, scoped, tag = 'input window, operand 1, single buffered']
    #allocation6 [shape = 's32[1]{0}', space=sflag, size = 0x4, scoped, tag = 'scoped memory for tpu_custom_call.1']
    #allocation7 [shape = 'u8[8192]{0}', space=vmem, size = 0x2000, scoped, tag = 'input window, operand 2, single buffered']
    #allocation8 [shape = 'u8[16384]{0}', space=vmem, size = 0x4000, scoped, tag = 'output window, operand 0']
    #allocation9 [shape = 'u8[8192]{0}', space=vmem, size = 0x2000, scoped, tag = 'output window, operand 1']
    #allocation10 [shape = 's32[2]{0}', space=sflag, size = 0x8, scoped, tag = 'scoped memory for tpu_custom_call.1']
    %10 = vsyncpa [#allocation3], 0
    %s11 = scalar_lea.sflag [#allocation3], 1
    %12 = vsyncpa %s11, 0
    %13 = vsyncpa [#allocation6], 0
    %14 = vsyncpa [#allocation4], 0
    %s15 = scalar_lea.sflag [#allocation4], 1
    %16 = vsyncpa %s15, 0
    %17 = vsyncpa [#allocation10], 0
    %s18 = scalar_lea.sflag [#allocation10], 1
    %19 = vsyncpa %s18, 0
    loop: start=0, step=1, limit=4
    $region2: #{tpu_custom_call.1} parent=1 // loop_pre_header
      _
    $region3: #{tpu_custom_call.1} parent=1 // loop_header
      %s21 = sphi 0, %s25
      %p22 = scmp.ge.s32.totalorder %s21, 4
      %s28 = sphi 0, %s40
      %s29 = sphi 0, %s36
      %s30 = sphi 0, %s28
      %s31 = sphi 0, %s29
      %s32 = sphi 0, %s30
      %s33 = sphi 0, %s31
      %s45 = sphi 0, %s47
      %s48 = sphi 0, %s45
      %s49 = sphi 0, %s48
      %s65 = sphi 0, %s49
      %s69 = sphi 0, %s69
      %s71 = sphi 0, %s69
      %s72 = sphi 0, %s71
      %s86 = sphi 0, %s72
      %s90 = sphi 0, %s90
      %s92 = sphi 0, %s90
      %s93 = sphi 0, %s92
      %s107 = sphi 0, %s93
      %s115 = sphi 0, %s117
      %s118 = sphi 0, %s115
      %s119 = sphi 0, %s118
      %s135 = sphi 0, %s119
      %s141 = sphi 0, %s143
      %s144 = sphi 0, %s141
      %s145 = sphi 0, %s144
      %s161 = sphi 0, %s145
    $region4: #{tpu_custom_call.1} parent=1 // loop_header_branch
      %24 = sbr.rel (%p22) target = $region8
    $region5: #{tpu_custom_call.1} parent=1 // loop_body
      %s26 = ssub.s32 %s21, 1
      %s27 = ssub.s32 %s21, 2
      %s34 = sadd.s32 1, %s29
      %p35 = scmp.ge.s32.totalorder %s34, 1
      %s36 = scalar_select %p35, 0, %s34
      %s37 = sadd.s32 1, %s28
      %s38 = scalar_select %p35, %s37, %s28
      %p39 = scmp.ge.s32.totalorder %s38, 2
      %s40 = scalar_select %p39, 0, %s38
      %s41 = ssub.s32 %s28, %s40
      %s42 = ssub.s32 %s29, %s36
      %s43 = sor.u32 %s41, %s42
      %p44 = scmp.eq.s32.totalorder %s43, 0
      %s46 = sadd.s32 %s45, 1
      %s47 = scalar_select %p44, %s45, %s46
      %p50 = pneg %p44
      %p51 = scmp.eq.s32.totalorder %s21, 1
      %p52 = por %p50, %p51
      %p53 = scmp.ne.s32.totalorder %s45, %s48
      %p54 = scmp.eq.s32.totalorder %s21, 0
      %p55 = por %p53, %p54
      %p56 = scmp.ne.s32.totalorder %s45, %s48
      %p57 = scmp.eq.s32.totalorder %s26, 1
      %p58 = por %p56, %p57
      %p59 = scmp.ne.s32.totalorder %s48, %s49
      %p60 = scmp.eq.s32.totalorder %s26, 0
      %p61 = por %p59, %p60
      %p62 = scmp.ne.s32.totalorder %s48, %s49
      %p63 = scmp.eq.s32.totalorder %s27, 1
      %p64 = por %p62, %p63
      %p66 = scmp.ne.s32.totalorder %s49, %s65
      %p67 = scmp.eq.s32.totalorder %s27, 0
      %p68 = por %p66, %p67
      %s70 = sadd.s32 %s69, 1
      %p73 = scmp.eq.s32.totalorder %s21, 1
      %p74 = scmp.ne.s32.totalorder %s69, %s71
      %p75 = scmp.eq.s32.totalorder %s21, 0
      %p76 = por %p74, %p75
      %p77 = scmp.ne.s32.totalorder %s69, %s71
      %p78 = scmp.eq.s32.totalorder %s26, 1
      %p79 = por %p77, %p78
      %p80 = scmp.ne.s32.totalorder %s71, %s72
      %p81 = scmp.eq.s32.totalorder %s26, 0
      %p82 = por %p80, %p81
      %p83 = scmp.ne.s32.totalorder %s71, %s72
      %p84 = scmp.eq.s32.totalorder %s27, 1
      %p85 = por %p83, %p84
      %p87 = scmp.ne.s32.totalorder %s72, %s86
      %p88 = scmp.eq.s32.totalorder %s27, 0
      %p89 = por %p87, %p88
      %s91 = sadd.s32 %s90, 1
      %p94 = scmp.eq.s32.totalorder %s21, 1
      %p95 = scmp.ne.s32.totalorder %s90, %s92
      %p96 = scmp.eq.s32.totalorder %s21, 0
      %p97 = por %p95, %p96
      %p98 = scmp.ne.s32.totalorder %s90, %s92
      %p99 = scmp.eq.s32.totalorder %s26, 1
      %p100 = por %p98, %p99
      %p101 = scmp.ne.s32.totalorder %s92, %s93
      %p102 = scmp.eq.s32.totalorder %s26, 0
      %p103 = por %p101, %p102
      %p104 = scmp.ne.s32.totalorder %s92, %s93
      %p105 = scmp.eq.s32.totalorder %s27, 1
      %p106 = por %p104, %p105
      %p108 = scmp.ne.s32.totalorder %s93, %s107
      %p109 = scmp.eq.s32.totalorder %s27, 0
      %p110 = por %p108, %p109
      %s111 = ssub.s32 %s28, %s40
      %s112 = ssub.s32 %s29, %s36
      %s113 = sor.u32 %s111, %s112
      %p114 = scmp.eq.s32.totalorder %s113, 0
      %s116 = sadd.s32 %s115, 1
      %s117 = scalar_select %p114, %s115, %s116
      %p120 = pneg %p114
      %p121 = scmp.eq.s32.totalorder %s21, 1
      %p122 = por %p120, %p121
      %p123 = scmp.ne.s32.totalorder %s115, %s118
      %p124 = scmp.eq.s32.totalorder %s21, 0
      %p125 = por %p123, %p124
      %p126 = scmp.ne.s32.totalorder %s115, %s118
      %p127 = scmp.eq.s32.totalorder %s26, 1
      %p128 = por %p126, %p127
      %p129 = scmp.ne.s32.totalorder %s118, %s119
      %p130 = scmp.eq.s32.totalorder %s26, 0
      %p131 = por %p129, %p130
      %p132 = scmp.ne.s32.totalorder %s118, %s119
      %p133 = scmp.eq.s32.totalorder %s27, 1
      %p134 = por %p132, %p133
      %p136 = scmp.ne.s32.totalorder %s119, %s135
      %p137 = scmp.eq.s32.totalorder %s27, 0
      %p138 = por %p136, %p137
      %s139 = ssub.s32 %s28, %s40
      %p140 = scmp.eq.s32.totalorder %s139, 0
      %s142 = sadd.s32 %s141, 1
      %s143 = scalar_select %p140, %s141, %s142
      %p146 = pneg %p140
      %p147 = scmp.eq.s32.totalorder %s21, 1
      %p148 = por %p146, %p147
      %p149 = scmp.ne.s32.totalorder %s141, %s144
      %p150 = scmp.eq.s32.totalorder %s21, 0
      %p151 = por %p149, %p150
      %p152 = scmp.ne.s32.totalorder %s141, %s144
      %p153 = scmp.eq.s32.totalorder %s26, 1
      %p154 = por %p152, %p153
      %p155 = scmp.ne.s32.totalorder %s144, %s145
      %p156 = scmp.eq.s32.totalorder %s26, 0
      %p157 = por %p155, %p156
      %p158 = scmp.ne.s32.totalorder %s144, %s145
      %p159 = scmp.eq.s32.totalorder %s27, 1
      %p160 = por %p158, %p159
      %p162 = scmp.ne.s32.totalorder %s145, %s161
      %p163 = scmp.eq.s32.totalorder %s27, 0
      %p164 = por %p162, %p163
      %p165 = scmp.le.s32.totalorder 1, %s21
      %p166 = scmp.lt.s32.totalorder %s21, 3
      %p167 = pnand %p165, %p166
      %p168 = pneg %p167
      // Predicated region
      $region9: #{tpu_custom_call.1} parent=5 // pred_check
        _
      $region10: #{tpu_custom_call.1} parent=5 // pred_check_branch
        %170 = sbr.rel (%p167) target = $region12
      $region11: #{tpu_custom_call.1} parent=5 // pred_region
        %s171 = ssub.s32 %s21, 1
        // Predicated region
        $region13: #{tpu_custom_call.1} parent=11 // pred_check
          %p172 = pneg %p82
        $region14: #{tpu_custom_call.1} parent=11 // pred_check_branch
          %174 = sbr.rel (%p172) target = $region16
        $region15: #{tpu_custom_call.1} parent=11 // pred_region
          %s176 = ssub.s32 128, 128
          %177 = vsyncadd [#allocation6], %s176
          %s178 = sshll.u32 [#allocation5], 4
          %s179 = int_to_ptr.vmem [resolvable:$true] %s178
          %184 = dma.hbm_to_vmem [thread:$0]  %s1, 128, %s179, [#allocation6], 64, 64, 4
        $region16: #{tpu_custom_call.1} parent=11 // pred_fallthru
          _
        // Predicated region
        $region17: #{tpu_custom_call.1} parent=11 // pred_check
          %p185 = pneg %p103
        $region18: #{tpu_custom_call.1} parent=11 // pred_check_branch
          %187 = sbr.rel (%p185) target = $region20
        $region19: #{tpu_custom_call.1} parent=11 // pred_region
          %s189 = ssub.s32 256, 256
          %190 = vsyncadd [#allocation6], %s189
          %s191 = sshll.u32 [#allocation7], 4
          %s192 = int_to_ptr.vmem [resolvable:$true] %s191
          %197 = dma.hbm_to_vmem [thread:$0]  %s2, 256, %s192, [#allocation6], 128, 128, 8
        $region20: #{tpu_custom_call.1} parent=11 // pred_fallthru
          _
      $region12: #{tpu_custom_call.1} parent=5 // pred_fallthru
        _
      %p198 = scmp.lt.s32.totalorder %s21, 2
      // Predicated region
      $region21: #{tpu_custom_call.1} parent=5 // pred_check
        %p199 = pneg %p198
      $region22: #{tpu_custom_call.1} parent=5 // pred_check_branch
        %201 = sbr.rel (%p199) target = $region24
      $region23: #{tpu_custom_call.1} parent=5 // pred_region
        // Predicated region
        $region25: #{tpu_custom_call.1} parent=23 // pred_check
          %p202 = pneg %p55
        $region26: #{tpu_custom_call.1} parent=23 // pred_check_branch
          %204 = sbr.rel (%p202) target = $region28
        $region27: #{tpu_custom_call.1} parent=23 // pred_region
          %s205 = sand.u32 %s45, 1
          %s206 = scalar_lea.sflag [#allocation3], %s205
          %s207 = sand.u32 %s45, 1
          %s208 = smul.addr %s207, 80
          %s209 = scalar_lea.vmem [#allocation2], %s208
          %s210 = smul.u32 2, %s29
          %s212 = ssub.s32 1280, 1280
          %213 = vsyncadd %s206, %s212
          %s214 = smul.addr %s28, 20
          %s215 = sadd.s32 %s210, %s214
          %s216 = smul.addr %s215, 64
          %s217 = scalar_lea.hbm %s0, %s216
          %s218 = sshll.u32 %s209, 4
          %s219 = int_to_ptr.vmem [resolvable:$true] %s218
          %224 = dma.hbm_to_vmem [thread:$0]  %s217, 1280, %s219, %s206, 128, 128, 8
        $region28: #{tpu_custom_call.1} parent=23 // pred_fallthru
          _
      $region24: #{tpu_custom_call.1} parent=5 // pred_fallthru
        _
      %p225 = scmp.le.s32.totalorder 1, %s21
      %p226 = scmp.lt.s32.totalorder %s21, 3
      %p227 = pnand %p225, %p226
      %p228 = pneg %p227
      // Predicated region
      $region29: #{tpu_custom_call.1} parent=5 // pred_check
        _
      $region30: #{tpu_custom_call.1} parent=5 // pred_check_branch
        %230 = sbr.rel (%p227) target = $region32
      $region31: #{tpu_custom_call.1} parent=5 // pred_region
        %s231 = ssub.s32 %s21, 1
        %s232 = sand.u32 %s48, 1
        %s233 = scalar_lea.sflag [#allocation3], %s232
        %s234 = sand.u32 %s48, 1
        %s235 = smul.addr %s234, 80
        %s236 = scalar_lea.vmem [#allocation2], %s235
        // Predicated region
        $region33: #{tpu_custom_call.1} parent=31 // pred_check
          %p237 = pneg %p61
        $region34: #{tpu_custom_call.1} parent=31 // pred_check_branch
          %239 = sbr.rel (%p237) target = $region36
        $region35: #{tpu_custom_call.1} parent=31 // pred_region
          %240 = dma.done %s233, 1280
        $region36: #{tpu_custom_call.1} parent=31 // pred_fallthru
          _
        // Predicated region
        $region37: #{tpu_custom_call.1} parent=31 // pred_check
          %p241 = pneg %p82
        $region38: #{tpu_custom_call.1} parent=31 // pred_check_branch
          %243 = sbr.rel (%p241) target = $region40
        $region39: #{tpu_custom_call.1} parent=31 // pred_region
          %244 = dma.done [#allocation6], 128
        $region40: #{tpu_custom_call.1} parent=31 // pred_fallthru
          _
        // Predicated region
        $region41: #{tpu_custom_call.1} parent=31 // pred_check
          %p245 = pneg %p103
        $region42: #{tpu_custom_call.1} parent=31 // pred_check_branch
          %247 = sbr.rel (%p245) target = $region44
        $region43: #{tpu_custom_call.1} parent=31 // pred_region
          %248 = dma.done [#allocation6], 256
        $region44: #{tpu_custom_call.1} parent=31 // pred_fallthru
          _
        %s249 = sand.u32 %s48, 1
        %s250 = scalar_lea.sflag [#allocation3], %s249
        %s251 = sand.u32 %s48, 1
        %s252 = smul.addr %s251, 80
        %s253 = scalar_lea.vmem [#allocation2], %s252
        %p254 = pneg %p61
        %p255 = pneg %p58
        %p256 = pneg %p82
        %p257 = pneg %p79
        %p258 = pneg %p103
        %p259 = pneg %p100
        %p260 = pneg %p131
        %p261 = pneg %p128
        %s262 = sand.u32 %s118, 1
        %s263 = scalar_lea.sflag [#allocation4], %s262
        %s264 = sand.u32 %s118, 1
        %s265 = smul.addr %s264, 16
        %s266 = scalar_lea.vmem [#allocation8], %s265
        %p267 = pneg %p157
        %p268 = pneg %p154
        %s269 = sand.u32 %s144, 1
        %s270 = scalar_lea.sflag [#allocation10], %s269
        %s271 = sand.u32 %s144, 1
        %s272 = smul.addr %s271, 8
        %s273 = scalar_lea.vmem [#allocation9], %s272
        %s274 = smul.u32 2, %s31
        %s275 = smul.u32 2, %s31
        %p277 = scmp.eq.s32.totalorder %s31, 0
        // Predicated region
        $region45: #{tpu_custom_call.1} parent=31 // pred_check
          %p278 = pneg %p277
        $region46: #{tpu_custom_call.1} parent=31 // pred_check_branch
          %280 = sbr.rel (%p278) target = $region48
        $region47: #{tpu_custom_call.1} parent=31 // pred_region
          %vm281 = vcmask 7168
          %282 = vst.msk [vmem:[%s273] sm:$0xff] %vm281, 0.0
        $region48: #{tpu_custom_call.1} parent=31 // pred_fallthru
          _
        %v283 = vld [vmem:[#allocation5] sm:$0xf]
        %v284 = vld [vmem:[%s236] sm:$0xff]
        %v285 = vld [vmem:[%s236 + $0x8] sm:$0xff]
        %v286 = vld [vmem:[%s236 + $0x10] sm:$0xff]
        %v287 = vld [vmem:[%s236 + $0x18] sm:$0xff]
        %v288 = vld [vmem:[%s236 + $0x20] sm:$0x33]
        %v289 = vld [vmem:[#allocation7] sm:$0xff]
        %291 = vset.pattern.permute.xlu0 0
        %292 = vperm.xlu0 %291, %v289
        %v293 = vpop.permute.xlu0 %292
        %v300 = vunpack.c.l.b16 %v284
        %v301 = vunpack.c.h.b16 %v284
        %v302 = vunpack.c.l.b16 %v285
        %v303 = vunpack.c.h.b16 %v285
        %v304 = vunpack.c.l.b16 %v286
        %v305 = vunpack.c.h.b16 %v286
        %v306 = vunpack.c.l.b16 %v287
        %v307 = vunpack.c.h.b16 %v287
        %v308 = vunpack.c.l.b16 %v288
        %v309 = vunpack.c.h.b16 %v288
        %v310 = vpack.c.b16 %v302, %v300
        %v311 = vpack.c.b16 %v303, %v301
        %v312 = vpack.c.b16 %v306, %v304
        %v313 = vpack.c.b16 %v307, %v305
        %v314 = vpack.c.b16 %v308, %v308
        %v315 = vpack.c.b16 %v309, %v309
        %vm320 = vcmask 293888
        %v322 = vsel %vm320, %v283, 0
        %vm324 = vcmask 1041408
        %v326 = vsel %vm324, %v314, 0
        %v329 = vsel %vm324, %v315, 0
        %331 = vmatprep.subr.bf16.mxu0 %v311
        %332 = vmatpush1.bf16.msra.mxu0 %v310
        %333 = vmatprep.subr.bf16.mxu0 %v313
        %334 = vmatpush1.bf16.msra.mxu0 %v312
        %335 = vmatprep.subr.bf16.mxu0 %v329
        %336 = vmatpush1.bf16.msra.mxu0 %v326
        %337 = vmatprep.subr.bf16.mxu0 0
        %338 = vmatpush1.bf16.msra.mxu0 0
        %339 = vmatprep.subr.bf16.mxu0 0
        %340 = vmatpush1.bf16.msra.mxu0 0
        %341 = vmatprep.subr.bf16.mxu0 0
        %342 = vmatpush1.bf16.msra.mxu0 0
        %343 = vmatprep.subr.bf16.mxu0 0
        %344 = vmatpush1.bf16.msra.mxu0 0
        %345 = vmatprep.subr.bf16.mxu0 0
        %346 = vmatpush1.bf16.msra.mxu0 0
        %347 = vmatprep.subr.bf16.mxu0 0
        %348 = vmatpush1.bf16.msra.mxu0 0
        %349 = vmatprep.subr.bf16.mxu0 0
        %350 = vmatpush1.bf16.msra.mxu0 0
        %351 = vmatprep.subr.bf16.mxu0 0
        %352 = vmatpush1.bf16.msra.mxu0 0
        %353 = vmatprep.subr.bf16.mxu0 0
        %354 = vmatpush1.bf16.msra.mxu0 0
        %355 = vmatprep.subr.bf16.mxu0 0
        %356 = vmatpush1.bf16.msra.mxu0 0
        %357 = vmatprep.subr.bf16.mxu0 0
        %358 = vmatpush1.bf16.msra.mxu0 0
        %359 = vmatprep.subr.bf16.mxu0 0
        %360 = vmatpush1.bf16.msra.mxu0 0
        %361 = vmatprep.subr.bf16.mxu0 0
        %362 = vmatpush1.bf16.msra.mxu0 0
        %363 = vmatprep.mubr.bf16.mxu0 0
        %364 = vmatmul.mubr.bf16.gmra.mrb[0].mxu0 %v322
        %v365 = vpop.f32.mrb[0].mxu0
        %v366 = vadd.f32 %v293, %v365
        %v367 = vpop.f32.mrb[0].mxu0
        %v368 = vadd.f32 %v293, %v367
        %v369 = vpop.f32.mrb[0].mxu0
        %v370 = vpop.f32.mrb[0].mxu0
        %371 = vdwg.mxu0
        %v372 = vmax.f32 %v366, 0.0
        %v373 = vmax.f32 %v368, 0.0
        %v374 = vpack.c.bf16 %v372, %v372
        %v375 = vpack.c.bf16 %v373, %v373
        %v378 = vunpack.c.l.b16 %v374
        %v379 = vunpack.c.l.b16 %v375
        %v380 = vpack.c.b16 %v379, %v378
        %382 = vst [vmem:[%s266] sm:$0xff] %v380
        %v383 = vadd.f32 %v372, %v373
        %384 = vadd.xlane.f32.xlu0 %v383
        %v385 = vpop.xlane.xlu0 %384
        %s386 = scalar_lea.vmem [#allocation5], 4
        %v387 = vld [vmem:[%s386] sm:$0xf]
        %s388 = scalar_lea.vmem %s236, 40 [#allocation2]
        %v389 = vld [vmem:[%s388] sm:$0xff]
        %v390 = vld [vmem:[%s388 + $0x8] sm:$0xff]
        %v391 = vld [vmem:[%s388 + $0x10] sm:$0xff]
        %v392 = vld [vmem:[%s388 + $0x18] sm:$0xff]
        %v393 = vld [vmem:[%s388 + $0x20] sm:$0x33]
        %s394 = scalar_lea.vmem [#allocation7], 8
        %v395 = vld [vmem:[%s394] sm:$0xff]
        %397 = vset.pattern.permute.xlu0 0
        %398 = vperm.xlu0 %397, %v395
        %v399 = vpop.permute.xlu0 %398
        %v406 = vunpack.c.l.b16 %v389
        %v407 = vunpack.c.h.b16 %v389
        %v408 = vunpack.c.l.b16 %v390
        %v409 = vunpack.c.h.b16 %v390
        %v410 = vunpack.c.l.b16 %v391
        %v411 = vunpack.c.h.b16 %v391
        %v412 = vunpack.c.l.b16 %v392
        %v413 = vunpack.c.h.b16 %v392
        %v414 = vunpack.c.l.b16 %v393
        %v415 = vunpack.c.h.b16 %v393
        %v416 = vpack.c.b16 %v408, %v406
        %v417 = vpack.c.b16 %v409, %v407
        %v418 = vpack.c.b16 %v412, %v410
        %v419 = vpack.c.b16 %v413, %v411
        %v420 = vpack.c.b16 %v414, %v414
        %v421 = vpack.c.b16 %v415, %v415
        %v427 = vsel %vm320, %v387, 0
        %v430 = vsel %vm324, %v420, 0
        %v433 = vsel %vm324, %v421, 0
        %435 = vmatprep.subr.bf16.mxu0 %v417
        %436 = vmatpush1.bf16.msra.mxu0 %v416
        %437 = vmatprep.subr.bf16.mxu0 %v419
        %438 = vmatpush1.bf16.msra.mxu0 %v418
        %439 = vmatprep.subr.bf16.mxu0 %v433
        %440 = vmatpush1.bf16.msra.mxu0 %v430
        %441 = vmatprep.subr.bf16.mxu0 0
        %442 = vmatpush1.bf16.msra.mxu0 0
        %443 = vmatprep.subr.bf16.mxu0 0
        %444 = vmatpush1.bf16.msra.mxu0 0
        %445 = vmatprep.subr.bf16.mxu0 0
        %446 = vmatpush1.bf16.msra.mxu0 0
        %447 = vmatprep.subr.bf16.mxu0 0
        %448 = vmatpush1.bf16.msra.mxu0 0
        %449 = vmatprep.subr.bf16.mxu0 0
        %450 = vmatpush1.bf16.msra.mxu0 0
        %451 = vmatprep.subr.bf16.mxu0 0
        %452 = vmatpush1.bf16.msra.mxu0 0
        %453 = vmatprep.subr.bf16.mxu0 0
        %454 = vmatpush1.bf16.msra.mxu0 0
        %455 = vmatprep.subr.bf16.mxu0 0
        %456 = vmatpush1.bf16.msra.mxu0 0
        %457 = vmatprep.subr.bf16.mxu0 0
        %458 = vmatpush1.bf16.msra.mxu0 0
        %459 = vmatprep.subr.bf16.mxu0 0
        %460 = vmatpush1.bf16.msra.mxu0 0
        %461 = vmatprep.subr.bf16.mxu0 0
        %462 = vmatpush1.bf16.msra.mxu0 0
        %463 = vmatprep.subr.bf16.mxu0 0
        %464 = vmatpush1.bf16.msra.mxu0 0
        %465 = vmatprep.subr.bf16.mxu0 0
        %466 = vmatpush1.bf16.msra.mxu0 0
        %467 = vmatprep.mubr.bf16.mxu0 0
        %468 = vmatmul.mubr.bf16.gmra.mrb[0].mxu0 %v427
        %v469 = vpop.f32.mrb[0].mxu0
        %v470 = vadd.f32 %v399, %v469
        %v471 = vpop.f32.mrb[0].mxu0
        %v472 = vadd.f32 %v399, %v471
        %v473 = vpop.f32.mrb[0].mxu0
        %v474 = vpop.f32.mrb[0].mxu0
        %475 = vdwg.mxu0
        %v476 = vmax.f32 %v470, 0.0
        %v477 = vmax.f32 %v472, 0.0
        %v478 = vpack.c.bf16 %v476, %v476
        %v479 = vpack.c.bf16 %v477, %v477
        %v482 = vunpack.c.l.b16 %v478
        %v483 = vunpack.c.l.b16 %v479
        %v484 = vpack.c.b16 %v483, %v482
        %s486 = scalar_lea.vmem %s266, 8 [#allocation8]
        %487 = vst [vmem:[%s486] sm:$0xff] %v484
        %v488 = vadd.f32 %v476, %v477
        %489 = vadd.xlane.f32.xlu0 %v488
        %v490 = vpop.xlane.xlu0 %489
        %v491 = vadd.f32 %v385, %v490
        %v492 = vld [vmem:[%s273] sm:$0xff]
        %v493 = vmul.f32 %v491, 0.00390625
        %v494 = vadd.f32 %v492, %v493
        %vm495 = vcmask 7168
        %496 = vst.msk [vmem:[%s273] sm:$0xff] %vm495, %v494
        %s497 = sand.u32 %s118, 1
        %s498 = scalar_lea.sflag [#allocation4], %s497
        %s499 = sand.u32 %s118, 1
        %s500 = smul.addr %s499, 16
        %s501 = scalar_lea.vmem [#allocation8], %s500
        %s502 = sand.u32 %s144, 1
        %s503 = scalar_lea.sflag [#allocation10], %s502
        %s504 = sand.u32 %s144, 1
        %s505 = smul.addr %s504, 8
        %s506 = scalar_lea.vmem [#allocation9], %s505
        // Predicated region
        $region49: #{tpu_custom_call.1} parent=31 // pred_check
          %p507 = pneg %p128
        $region50: #{tpu_custom_call.1} parent=31 // pred_check_branch
          %509 = sbr.rel (%p507) target = $region52
        $region51: #{tpu_custom_call.1} parent=31 // pred_region
          %s510 = smul.u32 2, %s31
          %s512 = ssub.s32 256, 256
          %513 = vsyncadd %s498, %s512
          %s514 = smul.addr %s30, 4
          %s515 = sadd.s32 %s510, %s514
          %s516 = smul.addr %s515, 64
          %s517 = scalar_lea.hbm %s3, %s516
          %s518 = sshll.u32 %s501, 4
          %s519 = int_to_ptr.vmem [resolvable:$true] %s518
          %524 = dma.vmem_to_hbm [thread:$0]  %s519, 256, %s517, %s498, 128, 128, 8
        $region52: #{tpu_custom_call.1} parent=31 // pred_fallthru
          _
        // Predicated region
        $region53: #{tpu_custom_call.1} parent=31 // pred_check
          %p525 = pneg %p154
        $region54: #{tpu_custom_call.1} parent=31 // pred_check_branch
          %527 = sbr.rel (%p525) target = $region56
        $region55: #{tpu_custom_call.1} parent=31 // pred_region
          %s529 = ssub.s32 128, 128
          %530 = vsyncadd %s503, %s529
          %s531 = smul.addr %s30, 128
          %s532 = scalar_lea.hbm %s4, %s531
          %s534 = sshll.u32 %s506, 4
          %s535 = int_to_ptr.vmem [resolvable:$true] %s534
          %537 = dma.vmem_to_hbm [thread:$0]  %s535, 128, %s532, %s503
        $region56: #{tpu_custom_call.1} parent=31 // pred_fallthru
          _
      $region32: #{tpu_custom_call.1} parent=5 // pred_fallthru
        _
      %p538 = scmp.le.s32.totalorder 2, %s21
      // Predicated region
      $region57: #{tpu_custom_call.1} parent=5 // pred_check
        %p539 = pneg %p538
      $region58: #{tpu_custom_call.1} parent=5 // pred_check_branch
        %541 = sbr.rel (%p539) target = $region60
      $region59: #{tpu_custom_call.1} parent=5 // pred_region
        %s542 = ssub.s32 %s21, 2
        // Predicated region
        $region61: #{tpu_custom_call.1} parent=59 // pred_check
          %p543 = pneg %p134
        $region62: #{tpu_custom_call.1} parent=59 // pred_check_branch
          %545 = sbr.rel (%p543) target = $region64
        $region63: #{tpu_custom_call.1} parent=59 // pred_region
          %s546 = sand.u32 %s119, 1
          %s547 = scalar_lea.sflag [#allocation4], %s546
          %s548 = sand.u32 %s119, 1
          %s549 = smul.addr %s548, 16
          %s550 = scalar_lea.vmem [#allocation8], %s549
          %551 = dma.done %s547, 256
        $region64: #{tpu_custom_call.1} parent=59 // pred_fallthru
          _
        // Predicated region
        $region65: #{tpu_custom_call.1} parent=59 // pred_check
          %p552 = pneg %p160
        $region66: #{tpu_custom_call.1} parent=59 // pred_check_branch
          %554 = sbr.rel (%p552) target = $region68
        $region67: #{tpu_custom_call.1} parent=59 // pred_region
          %s555 = sand.u32 %s145, 1
          %s556 = scalar_lea.sflag [#allocation10], %s555
          %s557 = sand.u32 %s145, 1
          %s558 = smul.addr %s557, 8
          %s559 = scalar_lea.vmem [#allocation9], %s558
          %560 = dma.done %s556, 128
        $region68: #{tpu_custom_call.1} parent=59 // pred_fallthru
          _
      $region60: #{tpu_custom_call.1} parent=5 // pred_fallthru
        _
    $region6: #{tpu_custom_call.1} parent=1 // loop_footer
      %s25 = sadd.s32 1, %s21
    $region7: #{tpu_custom_call.1} parent=1 // loop_footer_branch
      %20 = sbr.rel target = $region3
    $region8: #{tpu_custom_call.1} parent=1 // loop_exit
      _
    %561 = vsyncpa [#allocation3], 1
    %s562 = scalar_lea.sflag [#allocation3], 1
    %563 = vsyncpa %s562, 1
    %564 = vsyncpa [#allocation6], 1
    %565 = vsyncpa [#allocation4], 1
    %s566 = scalar_lea.sflag [#allocation4], 1
    %567 = vsyncpa %s566, 1
    %568 = vsyncpa [#allocation10], 1
    %s569 = scalar_lea.sflag [#allocation10], 1
    %570 = vsyncpa %s569, 1

</llo_original>
